<compile_context>
chip_gen: v7x
topology: tpu7x:2x2x1
jax: 0.10.0
libtpu: 0.0.40
codegen_flags: <defaults>
</compile_context>

<pallas_src>
import functools

import jax
import jax.numpy as jnp
from jax.experimental import pallas as pl
from jax.experimental.pallas import tpu as pltpu

_MIB = 1024 * 1024


def _round_up(x: int, m: int) -> int:
    return m * ((x + m - 1) // m)


def _round_hidden(hidden_dim: int, multiple_of: int = 256) -> int:
    return multiple_of * ((hidden_dim + multiple_of - 1) // multiple_of)


def _device_budget():
    """Generation-aware VMEM budget / tile caps, derived from physical VMEM."""
    try:
        vmem = pltpu.get_tpu_info().vmem_capacity_bytes
    except Exception:
        vmem = 64 * _MIB  # conservative default (v7x-sized)
    if vmem >= 96 * _MIB:
        # v5e / v6e: 128 MiB physical VMEM, single TensorCore per chip.
        return dict(vmem_limit=100 * _MIB, tm_max=1024, th_max=1024,
                    split_small_m=False)
    # v7x-like: 64 MiB per TensorCore, 2 TCs -> leave headroom, shard tokens.
    return dict(vmem_limit=48 * _MIB, tm_max=512, th_max=512,
                split_small_m=True)


def _mlp_kernel(x_ref, w1t_ref, w2t_ref, o_ref, acc_ref, *, nk):
    # x_ref:    (tm, D_pad)        token tile (resident across hidden axis)
    # w1t_ref:  (D_pad, th)        fc1.weight.T slab (pre-transposed in HBM)
    # w2t_ref:  (th, D_pad)        fc2.weight.T slab (pre-transposed in HBM)
    # o_ref:    (tm, D_pad)        output tile (resident across hidden axis)
    # acc_ref:  (tm, D_pad) f32    accumulator scratch
    k = pl.program_id(1)

    # h = x @ w1.T -> (tm, th), f32 accumulation on the MXU.
    h = jnp.dot(x_ref[...], w1t_ref[...], preferred_element_type=jnp.float32)
    # SiLU in f32 (exp goes to the EUP slot).
    h = h * jax.nn.sigmoid(h)
    # partial y = silu(h) @ w2.T -> (tm, D_pad).
    partial = jnp.dot(h.astype(w2t_ref.dtype), w2t_ref[...],
                      preferred_element_type=jnp.float32)

    if nk == 1:
        # Single hidden slab: no accumulator traffic at all.
        o_ref[...] = partial.astype(o_ref.dtype)
    else:
        @pl.when(k == 0)
        def _():
            acc_ref[...] = partial            # no zero-init + add

        @pl.when(jnp.logical_and(k > 0, k < nk - 1))
        def _():
            acc_ref[...] += partial

        @pl.when(k == nk - 1)
        def _():
            # Fused final accumulate + cast + store: saves one full f32
            # read-modify-write of the (tm, D_pad) accumulator per token tile.
            o_ref[...] = (acc_ref[...] + partial).astype(o_ref.dtype)


def prepare_mlp_weights(w1, w2, *, th: int = 512):
    """One-time (weight-load-time) prep: transpose to (K, N) layout and pad.

    w1: (hidden, dim)  fc1.weight (nn.Linear layout)
    w2: (dim, hidden)  fc2.weight (nn.Linear layout)

    Zero-padding is exact: padded hidden columns give silu(0)=0 and padded
    dim columns of the output are sliced off by the caller.
    """
    hidden, dim = w1.shape
    assert w2.shape == (dim, hidden)
    D_pad = _round_up(dim, 128)
    th_eff = min(_round_up(th, 128), _round_up(hidden, 128))
    H_pad = _round_up(hidden, th_eff)

    w1t = jnp.pad(w1.T, ((0, D_pad - dim), (0, H_pad - hidden)))   # (D_pad, H_pad)
    w2t = jnp.pad(w2.T, ((0, H_pad - hidden), (0, D_pad - dim)))   # (H_pad, D_pad)
    return dict(w1t=w1t, w2t=w2t, dim=dim, hidden=hidden,
                D_pad=D_pad, H_pad=H_pad, th=th_eff)


def _vmem_footprint(tm, th, D_pad, x_bytes, w_bytes, out_bytes):
    # Double-buffered pipelined blocks + resident f32 accumulator + (tm, th)
    # f32 intermediate.
    return (2 * tm * D_pad * x_bytes          # x tile
            + 2 * th * D_pad * w_bytes        # w1.T slab
            + 2 * th * D_pad * w_bytes        # w2.T slab
            + 2 * tm * D_pad * out_bytes      # output tile
            + tm * D_pad * 4                  # f32 accumulator scratch
            + tm * th * 4)                    # f32 hidden intermediate


def mlp_pallas_prepared(x, prepared, *, tm=None):
    """x: (..., dim); prepared: output of prepare_mlp_weights."""
    dim = prepared["dim"]
    D_pad = prepared["D_pad"]
    H_pad = prepared["H_pad"]
    w1t, w2t = prepared["w1t"], prepared["w2t"]
    budget = _device_budget()

    lead = x.shape[:-1]
    xf = x.reshape(-1, dim)
    M = xf.shape[0]

    # bf16 packs 16 rows per vreg; use 16-row token granularity for <32-bit.
    row_mult = 8 if x.dtype.itemsize >= 4 else 16

    tm_max = tm if tm is not None else budget["tm_max"]
    tm_eff = min(_round_up(tm_max, row_mult), _round_up(M, row_mult))

    # v7x megacore: if decode-sized M gives a single token tile, split it so
    # the "parallel" axis has >= 2 blocks (one per TensorCore).
    if budget["split_small_m"] and M > row_mult and _round_up(M, tm_eff) == tm_eff:
        tm_eff = _round_up((M + 1) // 2, row_mult)

    # Hidden slab: largest multiple of 128 <= cap that divides H_pad.
    th_eff = min(prepared["th"], budget["th_max"])
    while H_pad % th_eff:
        th_eff -= 128

    # Shrink tiles until the double-buffered working set fits the VMEM budget.
    x_b = x.dtype.itemsize
    w_b = w1t.dtype.itemsize
    while (_vmem_footprint(tm_eff, th_eff, D_pad, x_b, w_b, x_b)
           > budget["vmem_limit"] - 4 * _MIB):
        if tm_eff > th_eff and tm_eff > row_mult:
            tm_eff = max(row_mult, _round_up(tm_eff // 2, row_mult))
        elif th_eff > 128:
            new_th = th_eff - 128
            while new_th > 128 and H_pad % new_th:
                new_th -= 128
            th_eff = new_th
        elif tm_eff > row_mult:
            tm_eff = max(row_mult, _round_up(tm_eff // 2, row_mult))
        else:
            break

    M_pad = _round_up(M, tm_eff)
    if (M_pad, D_pad) != xf.shape:
        xf = jnp.pad(xf, ((0, M_pad - M), (0, D_pad - dim)))

    grid = (M_pad // tm_eff, H_pad // th_eff)
    nk = grid[1]

    out = pl.pallas_call(
        functools.partial(_mlp_kernel, nk=nk),
        out_shape=jax.ShapeDtypeStruct((M_pad, D_pad), x.dtype),
        grid_spec=pltpu.PrefetchScalarGridSpec(
            num_scalar_prefetch=0,
            grid=grid,
            in_specs=[
                pl.BlockSpec((tm_eff, D_pad), lambda i, k: (i, 0)),   # x tile
                pl.BlockSpec((D_pad, th_eff), lambda i, k: (0, k)),   # w1.T slab
                pl.BlockSpec((th_eff, D_pad), lambda i, k: (k, 0)),   # w2.T slab
            ],
            out_specs=pl.BlockSpec((tm_eff, D_pad), lambda i, k: (i, 0)),
            scratch_shapes=[pltpu.VMEM((tm_eff, D_pad), jnp.float32)],
        ),
        compiler_params=pltpu.CompilerParams(
            dimension_semantics=("parallel", "arbitrary"),
            vmem_limit_bytes=budget["vmem_limit"],
        ),
    )(xf, w1t, w2t)

    return out[:M, :dim].reshape(*lead, dim)


def mlp_pallas(x, w1, w2, *, tm=None, th=512):
    """Convenience wrapper. For production, call prepare_mlp_weights once at
    weight-load time and reuse the result (avoids per-call HBM pad/transpose)."""
    return mlp_pallas_prepared(x, prepare_mlp_weights(w1, w2, th=th), tm=tm)


def mlp_ref(x, w1, w2):
    h = jnp.einsum("...d,hd->...h", x, w1)
    h = h * jax.nn.sigmoid(h)
    return jnp.einsum("...h,dh->...d", h, w2)


# TODO(synk): optional int8 weight quantization for v5e/v6e (fp8 on v7x) —
# not implemented; weights are consumed in their given dtype.

if __name__ == "__main__":
    batch, seq, dim = 2, 8, 32
    hidden_req, multiple_of = 96, 256
    hidden = _round_hidden(hidden_req, multiple_of)   # -> 256 (matches nn.Module)

    key = jax.random.PRNGKey(0)
    kx, k1, k2 = jax.random.split(key, 3)

    x = jax.random.normal(kx, (batch, seq, dim), dtype=jnp.float32)
    # nn.Linear weight shapes: fc1.weight (hidden, dim), fc2.weight (dim, hidden)
    w1 = jax.random.normal(k1, (hidden, dim), dtype=jnp.float32) * (dim ** -0.5)
    w2 = jax.random.normal(k2, (dim, hidden), dtype=jnp.float32) * (hidden ** -0.5)

    # Load-time weight prep (transpose + pad once), then the hot-path call.
    prepared = prepare_mlp_weights(w1, w2)
    y = mlp_pallas_prepared(x, prepared)
    y = jax.block_until_ready(y)

    y_ref = mlp_ref(x, w1, w2)
    assert y.shape == (batch, seq, dim)
    assert jnp.allclose(y, y_ref, atol=2e-2, rtol=2e-2)

    # bf16 fast path (intended production dtype), looser tolerance.
    prepared_bf = prepare_mlp_weights(w1.astype(jnp.bfloat16),
                                      w2.astype(jnp.bfloat16))
    yb = mlp_pallas_prepared(x.astype(jnp.bfloat16), prepared_bf)
    yb = jax.block_until_ready(yb)
    assert jnp.allclose(yb.astype(jnp.float32), y_ref, atol=1e-1, rtol=1e-1)

    print("KERNEL_OK")
</pallas_src>

<mosaic_0001>
module attributes {stable_mosaic.version = 11 : i64} {
  func.func @_mlp_kernel(%arg0: i32, %arg1: i32, %arg2: memref<8x128xf32, #tpu.memory_space<vmem>>, %arg3: memref<128x256xf32, #tpu.memory_space<vmem>>, %arg4: memref<256x128xf32, #tpu.memory_space<vmem>>, %arg5: memref<8x128xf32, #tpu.memory_space<vmem>>, %arg6: memref<8x128xf32, #tpu.memory_space<vmem>>) attributes {dimension_semantics = [#tpu.dimension_semantics<parallel>, #tpu.dimension_semantics<arbitrary>], iteration_bounds = array<i64: 2, 1>, scalar_prefetch = 0 : i64, scratch_operands = 1 : i64, tpu.core_type = #tpu.core_type<tc>, window_params = [{transform_indices = @transform_0, window_bounds = array<i64: 8, 128>}, {transform_indices = @transform_1, window_bounds = array<i64: 128, 256>}, {transform_indices = @transform_2, window_bounds = array<i64: 256, 128>}, {transform_indices = @transform_3, window_bounds = array<i64: 8, 128>}]} {
    %c0 = arith.constant 0 : index
    %c0_0 = arith.constant 0 : index
    %0 = vector.load %arg2[%c0, %c0_0] : memref<8x128xf32, #tpu.memory_space<vmem>>, vector<8x128xf32>
    %c0_1 = arith.constant 0 : index
    %c0_2 = arith.constant 0 : index
    %1 = vector.load %arg3[%c0_1, %c0_2] : memref<128x256xf32, #tpu.memory_space<vmem>>, vector<128x256xf32>
    %cst = arith.constant dense<0.000000e+00> : vector<8x256xf32>
    %2 = tpu.matmul %0, %1, %cst {dimension_numbers = #tpu.dot_dimension_numbers<[1], [0], [0], [1], [0, 0, 1, 1], [], []>} : vector<8x128xf32>, vector<128x256xf32>, vector<8x256xf32> -> vector<8x256xf32>
    %3 = arith.negf %2 : vector<8x256xf32>
    %4 = math.exp %3 : vector<8x256xf32>
    %cst_3 = arith.constant 1.000000e+00 : f32
    %5 = vector.broadcast %cst_3 : f32 to vector<8x256xf32>
    %6 = arith.addf %5, %4 : vector<8x256xf32>
    %7 = arith.divf %5, %6 : vector<8x256xf32>
    %8 = arith.mulf %2, %7 : vector<8x256xf32>
    %c0_4 = arith.constant 0 : index
    %c0_5 = arith.constant 0 : index
    %9 = vector.load %arg4[%c0_4, %c0_5] : memref<256x128xf32, #tpu.memory_space<vmem>>, vector<256x128xf32>
    %cst_6 = arith.constant dense<0.000000e+00> : vector<8x128xf32>
    %10 = tpu.matmul %8, %9, %cst_6 {dimension_numbers = #tpu.dot_dimension_numbers<[1], [0], [0], [1], [0, 0, 1, 1], [], []>} : vector<8x256xf32>, vector<256x128xf32>, vector<8x128xf32> -> vector<8x128xf32>
    %c0_7 = arith.constant 0 : index
    %c0_8 = arith.constant 0 : index
    %11 = vector.load %arg5[%c0_7, %c0_8] : memref<8x128xf32, #tpu.memory_space<vmem>>, vector<8x128xf32>
    tpu.vector_store %arg5[%c0_7, %c0_8], %10 {strides = array<i32>} : memref<8x128xf32, #tpu.memory_space<vmem>>, vector<8x128xf32>,
    return
  }
  func.func @transform_0(%arg0: i32, %arg1: i32) -> (i32, i32) {
    %c0_i32 = arith.constant 0 : i32
    %c0_i32_0 = arith.constant 0 : i32
    return %arg0, %c0_i32 : i32, i32
  }
  func.func @transform_1(%arg0: i32, %arg1: i32) -> (i32, i32) {
    %c0_i32 = arith.constant 0 : i32
    %c0_i32_0 = arith.constant 0 : i32
    return %c0_i32, %arg1 : i32, i32
  }
  func.func @transform_2(%arg0: i32, %arg1: i32) -> (i32, i32) {
    %c0_i32 = arith.constant 0 : i32
    %c0_i32_0 = arith.constant 0 : i32
    return %arg1, %c0_i32 : i32, i32
  }
  func.func @transform_3(%arg0: i32, %arg1: i32) -> (i32, i32) {
    %c0_i32 = arith.constant 0 : i32
    %c0_i32_0 = arith.constant 0 : i32
    return %arg0, %c0_i32 : i32, i32
  }
}

</mosaic_0001>

<llo_original>
// kernel: tpu_custom_call.1
$region0: #{tpu_custom_call.1}
  #allocation0 [shape = 'u32[]', space=smem, size = 0x4, offset = 0x4, fixed_abs, tag = 'smem constant byte address 0x4 - core index']
  #allocation1 [shape = 'u32[144,128]{1,0:T(1,128)}', space=vmem, size = 0x12000, scoped, tag = 'internal scratch']
  #allocation2 [shape = 'f32[8,128]{1,0:T(8,128)}', space=vmem, size = 0x1000, scoped, tag = 'scratch operand']
  %s0 = inlined_call_operand.hbm [shape: f32[16,128], index: 0, kind: input, shape index: {}]
  %s1 = inlined_call_operand.hbm [shape: f32[128,256], index: 1, kind: input, shape index: {}]
  %s2 = inlined_call_operand.hbm [shape: f32[256,128], index: 2, kind: input, shape index: {}]
  %s3 = inlined_call_operand.hbm [shape: f32[16,128], index: 3, kind: output, shape index: {}]
  %s4 = sld [smem:[#allocation0]]
  $region57: #{tpu_custom_call.1} parent=0
    _
  %s6 = ssub.s32 1, %s4
  %s7 = scalar_select 0, %s6, %s4
  $region1: #{tpu_custom_call.1} parent=0
    #allocation3 [shape = 'u8[8192]{0}', space=vmem, size = 0x2000, scoped, tag = 'input window, operand 0']
    #allocation4 [shape = 's32[2]{0}', space=sflag, size = 0x8, scoped, tag = 'scoped memory for tpu_custom_call.1']
    #allocation5 [shape = 's32[2]{0}', space=sflag, size = 0x8, scoped, tag = 'scoped memory for tpu_custom_call.1']
    #allocation6 [shape = 'u8[131072]{0}', space=vmem, size = 0x20000, scoped, tag = 'input window, operand 1, single buffered']
    #allocation7 [shape = 's32[1]{0}', space=sflag, size = 0x4, scoped, tag = 'scoped memory for tpu_custom_call.1']
    #allocation8 [shape = 'u8[131072]{0}', space=vmem, size = 0x20000, scoped, tag = 'input window, operand 2, single buffered']
    #allocation9 [shape = 'u8[8192]{0}', space=vmem, size = 0x2000, scoped, tag = 'output window, operand 0']
    %8 = vsyncpa [#allocation4], 0
    %s9 = scalar_lea.sflag [#allocation4], 1
    %10 = vsyncpa %s9, 0
    %11 = vsyncpa [#allocation7], 0
    %12 = vsyncpa [#allocation5], 0
    %s13 = scalar_lea.sflag [#allocation5], 1
    %14 = vsyncpa %s13, 0
    loop: start=0, step=1, limit=4
    $region2: #{tpu_custom_call.1} parent=1 // loop_pre_header
      _
    $region3: #{tpu_custom_call.1} parent=1 // loop_header
      %s16 = sphi 0, %s20
      %p17 = scmp.ge.s32.totalorder %s16, 4
      %s23 = sphi 0, %s35
      %s24 = sphi 0, %s31
      %s25 = sphi 0, %s23
      %s26 = sphi 0, %s24
      %s27 = sphi 0, %s25
      %s28 = sphi 0, %s26
      %s38 = sphi 0, %s40
      %s41 = sphi 0, %s38
      %s42 = sphi 0, %s41
      %s58 = sphi 0, %s42
      %s64 = sphi 0, %s66
      %s67 = sphi 0, %s64
      %s68 = sphi 0, %s67
      %s84 = sphi 0, %s68
      %s90 = sphi 0, %s92
      %s93 = sphi 0, %s90
      %s94 = sphi 0, %s93
      %s110 = sphi 0, %s94
      %s116 = sphi 0, %s118
      %s119 = sphi 0, %s116
      %s120 = sphi 0, %s119
      %s136 = sphi 0, %s120
    $region4: #{tpu_custom_call.1} parent=1 // loop_header_branch
      %19 = sbr.rel (%p17) target = $region8
    $region5: #{tpu_custom_call.1} parent=1 // loop_body
      %s21 = ssub.s32 %s16, 1
      %s22 = ssub.s32 %s16, 2
      %s29 = sadd.s32 1, %s24
      %p30 = scmp.ge.s32.totalorder %s29, 1
      %s31 = scalar_select %p30, 0, %s29
      %s32 = sadd.s32 1, %s23
      %s33 = scalar_select %p30, %s32, %s23
      %p34 = scmp.ge.s32.totalorder %s33, 2
      %s35 = scalar_select %p34, 0, %s33
      %s36 = ssub.s32 %s23, %s35
      %p37 = scmp.eq.s32.totalorder %s36, 0
      %s39 = sadd.s32 %s38, 1
      %s40 = scalar_select %p37, %s38, %s39
      %p43 = pneg %p37
      %p44 = scmp.eq.s32.totalorder %s16, 1
      %p45 = por %p43, %p44
      %p46 = scmp.ne.s32.totalorder %s38, %s41
      %p47 = scmp.eq.s32.totalorder %s16, 0
      %p48 = por %p46, %p47
      %p49 = scmp.ne.s32.totalorder %s38, %s41
      %p50 = scmp.eq.s32.totalorder %s21, 1
      %p51 = por %p49, %p50
      %p52 = scmp.ne.s32.totalorder %s41, %s42
      %p53 = scmp.eq.s32.totalorder %s21, 0
      %p54 = por %p52, %p53
      %p55 = scmp.ne.s32.totalorder %s41, %s42
      %p56 = scmp.eq.s32.totalorder %s22, 1
      %p57 = por %p55, %p56
      %p59 = scmp.ne.s32.totalorder %s42, %s58
      %p60 = scmp.eq.s32.totalorder %s22, 0
      %p61 = por %p59, %p60
      %s62 = ssub.s32 %s24, %s31
      %p63 = scmp.eq.s32.totalorder %s62, 0
      %s65 = sadd.s32 %s64, 1
      %s66 = scalar_select %p63, %s64, %s65
      %p69 = pneg %p63
      %p70 = scmp.eq.s32.totalorder %s16, 1
      %p71 = por %p69, %p70
      %p72 = scmp.ne.s32.totalorder %s64, %s67
      %p73 = scmp.eq.s32.totalorder %s16, 0
      %p74 = por %p72, %p73
      %p75 = scmp.ne.s32.totalorder %s64, %s67
      %p76 = scmp.eq.s32.totalorder %s21, 1
      %p77 = por %p75, %p76
      %p78 = scmp.ne.s32.totalorder %s67, %s68
      %p79 = scmp.eq.s32.totalorder %s21, 0
      %p80 = por %p78, %p79
      %p81 = scmp.ne.s32.totalorder %s67, %s68
      %p82 = scmp.eq.s32.totalorder %s22, 1
      %p83 = por %p81, %p82
      %p85 = scmp.ne.s32.totalorder %s68, %s84
      %p86 = scmp.eq.s32.totalorder %s22, 0
      %p87 = por %p85, %p86
      %s88 = ssub.s32 %s24, %s31
      %p89 = scmp.eq.s32.totalorder %s88, 0
      %s91 = sadd.s32 %s90, 1
      %s92 = scalar_select %p89, %s90, %s91
      %p95 = pneg %p89
      %p96 = scmp.eq.s32.totalorder %s16, 1
      %p97 = por %p95, %p96
      %p98 = scmp.ne.s32.totalorder %s90, %s93
      %p99 = scmp.eq.s32.totalorder %s16, 0
      %p100 = por %p98, %p99
      %p101 = scmp.ne.s32.totalorder %s90, %s93
      %p102 = scmp.eq.s32.totalorder %s21, 1
      %p103 = por %p101, %p102
      %p104 = scmp.ne.s32.totalorder %s93, %s94
      %p105 = scmp.eq.s32.totalorder %s21, 0
      %p106 = por %p104, %p105
      %p107 = scmp.ne.s32.totalorder %s93, %s94
      %p108 = scmp.eq.s32.totalorder %s22, 1
      %p109 = por %p107, %p108
      %p111 = scmp.ne.s32.totalorder %s94, %s110
      %p112 = scmp.eq.s32.totalorder %s22, 0
      %p113 = por %p111, %p112
      %s114 = ssub.s32 %s23, %s35
      %p115 = scmp.eq.s32.totalorder %s114, 0
      %s117 = sadd.s32 %s116, 1
      %s118 = scalar_select %p115, %s116, %s117
      %p121 = pneg %p115
      %p122 = scmp.eq.s32.totalorder %s16, 1
      %p123 = por %p121, %p122
      %p124 = scmp.ne.s32.totalorder %s116, %s119
      %p125 = scmp.eq.s32.totalorder %s16, 0
      %p126 = por %p124, %p125
      %p127 = scmp.ne.s32.totalorder %s116, %s119
      %p128 = scmp.eq.s32.totalorder %s21, 1
      %p129 = por %p127, %p128
      %p130 = scmp.ne.s32.totalorder %s119, %s120
      %p131 = scmp.eq.s32.totalorder %s21, 0
      %p132 = por %p130, %p131
      %p133 = scmp.ne.s32.totalorder %s119, %s120
      %p134 = scmp.eq.s32.totalorder %s22, 1
      %p135 = por %p133, %p134
      %p137 = scmp.ne.s32.totalorder %s120, %s136
      %p138 = scmp.eq.s32.totalorder %s22, 0
      %p139 = por %p137, %p138
      %p140 = scmp.le.s32.totalorder 1, %s16
      %p141 = scmp.lt.s32.totalorder %s16, 3
      %p142 = pnand %p140, %p141
      %p143 = pneg %p142
      // Predicated region
      $region9: #{tpu_custom_call.1} parent=5 // pred_check
        _
      $region10: #{tpu_custom_call.1} parent=5 // pred_check_branch
        %145 = sbr.rel (%p142) target = $region12
      $region11: #{tpu_custom_call.1} parent=5 // pred_region
        %s146 = ssub.s32 %s16, 1
        // Predicated region
        $region13: #{tpu_custom_call.1} parent=11 // pred_check
          %p147 = pneg %p80
        $region14: #{tpu_custom_call.1} parent=11 // pred_check_branch
          %149 = sbr.rel (%p147) target = $region16
        $region15: #{tpu_custom_call.1} parent=11 // pred_region
          %s150 = smul.u32 2, %s26
          %s152 = ssub.s32 4096, 4096
          %153 = vsyncadd [#allocation7], %s152
          %s154 = smul.addr %s150, 128
          %s155 = scalar_lea.hbm %s1, %s154
          %s156 = sshll.u32 [#allocation6], 4
          %s157 = int_to_ptr.vmem [resolvable:$true] %s156
          %162 = dma.hbm_to_vmem [thread:$0]  %s155, 4096, %s157, [#allocation7], 256, 256, 16
        $region16: #{tpu_custom_call.1} parent=11 // pred_fallthru
          _
        // Predicated region
        $region17: #{tpu_custom_call.1} parent=11 // pred_check
          %p163 = pneg %p106
        $region18: #{tpu_custom_call.1} parent=11 // pred_check_branch
          %165 = sbr.rel (%p163) target = $region20
        $region19: #{tpu_custom_call.1} parent=11 // pred_region
          %s166 = smul.u32 32, %s26
          %s168 = ssub.s32 4096, 4096
          %169 = vsyncadd [#allocation7], %s168
          %s170 = smul.addr %s166, 128
          %s171 = scalar_lea.hbm %s2, %s170
          %s172 = sshll.u32 [#allocation8], 4
          %s173 = int_to_ptr.vmem [resolvable:$true] %s172
          %178 = dma.hbm_to_vmem [thread:$0]  %s171, 4096, %s173, [#allocation7], 128, 128, 8
        $region20: #{tpu_custom_call.1} parent=11 // pred_fallthru
          _
      $region12: #{tpu_custom_call.1} parent=5 // pred_fallthru
        _
      %p179 = scmp.lt.s32.totalorder %s16, 2
      // Predicated region
      $region21: #{tpu_custom_call.1} parent=5 // pred_check
        %p180 = pneg %p179
      $region22: #{tpu_custom_call.1} parent=5 // pred_check_branch
        %182 = sbr.rel (%p180) target = $region24
      $region23: #{tpu_custom_call.1} parent=5 // pred_region
        // Predicated region
        $region25: #{tpu_custom_call.1} parent=23 // pred_check
          %p183 = pneg %p48
        $region26: #{tpu_custom_call.1} parent=23 // pred_check_branch
          %185 = sbr.rel (%p183) target = $region28
        $region27: #{tpu_custom_call.1} parent=23 // pred_region
          %s186 = sand.u32 %s38, 1
          %s187 = scalar_lea.sflag [#allocation4], %s186
          %s188 = sand.u32 %s38, 1
          %s189 = smul.addr %s188, 8
          %s190 = scalar_lea.vmem [#allocation3], %s189
          %s192 = ssub.s32 128, 128
          %193 = vsyncadd %s187, %s192
          %s194 = smul.addr %s23, 128
          %s195 = scalar_lea.hbm %s0, %s194
          %s197 = sshll.u32 %s190, 4
          %s198 = int_to_ptr.vmem [resolvable:$true] %s197
          %200 = dma.hbm_to_vmem [thread:$0]  %s195, 128, %s198, %s187
        $region28: #{tpu_custom_call.1} parent=23 // pred_fallthru
          _
      $region24: #{tpu_custom_call.1} parent=5 // pred_fallthru
        _
      %p201 = scmp.le.s32.totalorder 1, %s16
      %p202 = scmp.lt.s32.totalorder %s16, 3
      %p203 = pnand %p201, %p202
      %p204 = pneg %p203
      // Predicated region
      $region29: #{tpu_custom_call.1} parent=5 // pred_check
        _
      $region30: #{tpu_custom_call.1} parent=5 // pred_check_branch
        %206 = sbr.rel (%p203) target = $region32
      $region31: #{tpu_custom_call.1} parent=5 // pred_region
        %s207 = ssub.s32 %s16, 1
        %s208 = sand.u32 %s41, 1
        %s209 = scalar_lea.sflag [#allocation4], %s208
        %s210 = sand.u32 %s41, 1
        %s211 = smul.addr %s210, 8
        %s212 = scalar_lea.vmem [#allocation3], %s211
        // Predicated region
        $region33: #{tpu_custom_call.1} parent=31 // pred_check
          %p213 = pneg %p54
        $region34: #{tpu_custom_call.1} parent=31 // pred_check_branch
          %215 = sbr.rel (%p213) target = $region36
        $region35: #{tpu_custom_call.1} parent=31 // pred_region
          %216 = dma.done %s209, 128
        $region36: #{tpu_custom_call.1} parent=31 // pred_fallthru
          _
        // Predicated region
        $region37: #{tpu_custom_call.1} parent=31 // pred_check
          %p217 = pneg %p80
        $region38: #{tpu_custom_call.1} parent=31 // pred_check_branch
          %219 = sbr.rel (%p217) target = $region40
        $region39: #{tpu_custom_call.1} parent=31 // pred_region
          %220 = dma.done [#allocation7], 4096
        $region40: #{tpu_custom_call.1} parent=31 // pred_fallthru
          _
        // Predicated region
        $region41: #{tpu_custom_call.1} parent=31 // pred_check
          %p221 = pneg %p106
        $region42: #{tpu_custom_call.1} parent=31 // pred_check_branch
          %223 = sbr.rel (%p221) target = $region44
        $region43: #{tpu_custom_call.1} parent=31 // pred_region
          %224 = dma.done [#allocation7], 4096
        $region44: #{tpu_custom_call.1} parent=31 // pred_fallthru
          _
        %s225 = sand.u32 %s41, 1
        %s226 = scalar_lea.sflag [#allocation4], %s225
        %s227 = sand.u32 %s41, 1
        %s228 = smul.addr %s227, 8
        %s229 = scalar_lea.vmem [#allocation3], %s228
        %p230 = pneg %p54
        %p231 = pneg %p51
        %p232 = pneg %p80
        %p233 = pneg %p77
        %p234 = pneg %p106
        %p235 = pneg %p103
        %p236 = pneg %p132
        %p237 = pneg %p129
        %s238 = sand.u32 %s119, 1
        %s239 = scalar_lea.sflag [#allocation5], %s238
        %s240 = sand.u32 %s119, 1
        %s241 = smul.addr %s240, 8
        %s242 = scalar_lea.vmem [#allocation9], %s241
        %s243 = smul.u32 2, %s26
        %s244 = smul.u32 32, %s26
        %v245 = vld [vmem:[%s212] sm:$0xff]
        %v246 = vld [vmem:[#allocation6] sm:$0xff]
        %v247 = vld [vmem:[#allocation6 + $0x8] sm:$0xff]
        %v248 = vld [vmem:[#allocation6 + $0x10] sm:$0xff]
        %v249 = vld [vmem:[#allocation6 + $0x18] sm:$0xff]
        %v250 = vld [vmem:[#allocation6 + $0x20] sm:$0xff]
        %v251 = vld [vmem:[#allocation6 + $0x28] sm:$0xff]
        %v252 = vld [vmem:[#allocation6 + $0x30] sm:$0xff]
        %v253 = vld [vmem:[#allocation6 + $0x38] sm:$0xff]
        %v254 = vld [vmem:[#allocation6 + $0x40] sm:$0xff]
        %v255 = vld [vmem:[#allocation6 + $0x48] sm:$0xff]
        %v256 = vld [vmem:[#allocation6 + $0x50] sm:$0xff]
        %v257 = vld [vmem:[#allocation6 + $0x58] sm:$0xff]
        %v258 = vld [vmem:[#allocation6 + $0x60] sm:$0xff]
        %v259 = vld [vmem:[#allocation6 + $0x68] sm:$0xff]
        %v260 = vld [vmem:[#allocation6 + $0x70] sm:$0xff]
        %v261 = vld [vmem:[#allocation6 + $0x78] sm:$0xff]
        %v262 = vld [vmem:[#allocation6 + $0x80] sm:$0xff]
        %v263 = vld [vmem:[#allocation6 + $0x88] sm:$0xff]
        %v264 = vld [vmem:[#allocation6 + $0x90] sm:$0xff]
        %v265 = vld [vmem:[#allocation6 + $0x98] sm:$0xff]
        %v266 = vld [vmem:[#allocation6 + $0xa0] sm:$0xff]
        %v267 = vld [vmem:[#allocation6 + $0xa8] sm:$0xff]
        %v268 = vld [vmem:[#allocation6 + $0xb0] sm:$0xff]
        %v269 = vld [vmem:[#allocation6 + $0xb8] sm:$0xff]
        %v270 = vld [vmem:[#allocation6 + $0xc0] sm:$0xff]
        %v271 = vld [vmem:[#allocation6 + $0xc8] sm:$0xff]
        %v272 = vld [vmem:[#allocation6 + $0xd0] sm:$0xff]
        %v273 = vld [vmem:[#allocation6 + $0xd8] sm:$0xff]
        %v274 = vld [vmem:[#allocation6 + $0xe0] sm:$0xff]
        %v275 = vld [vmem:[#allocation6 + $0xe8] sm:$0xff]
        %v276 = vld [vmem:[#allocation6 + $0xf0] sm:$0xff]
        %v277 = vld [vmem:[#allocation6 + $0xf8] sm:$0xff]
        %278 = vmatprep.subr.mxu0 %v247
        %279 = vmatpush1.msra.mxu0 %v246
        %280 = vmatprep.subr.mxu0 %v249
        %281 = vmatpush1.msra.mxu0 %v248
        %282 = vmatprep.subr.mxu0 %v251
        %283 = vmatpush1.msra.mxu0 %v250
        %284 = vmatprep.subr.mxu0 %v253
        %285 = vmatpush1.msra.mxu0 %v252
        %286 = vmatprep.subr.mxu0 %v255
        %287 = vmatpush1.msra.mxu0 %v254
        %288 = vmatprep.subr.mxu0 %v257
        %289 = vmatpush1.msra.mxu0 %v256
        %290 = vmatprep.subr.mxu0 %v259
        %291 = vmatpush1.msra.mxu0 %v258
        %292 = vmatprep.subr.mxu0 %v261
        %293 = vmatpush1.msra.mxu0 %v260
        %294 = vmatprep.subr.mxu0 %v263
        %295 = vmatpush1.msra.mxu0 %v262
        %296 = vmatprep.subr.mxu0 %v265
        %297 = vmatpush1.msra.mxu0 %v264
        %298 = vmatprep.subr.mxu0 %v267
        %299 = vmatpush1.msra.mxu0 %v266
        %300 = vmatprep.subr.mxu0 %v269
        %301 = vmatpush1.msra.mxu0 %v268
        %302 = vmatprep.subr.mxu0 %v271
        %303 = vmatpush1.msra.mxu0 %v270
        %304 = vmatprep.subr.mxu0 %v273
        %305 = vmatpush1.msra.mxu0 %v272
        %306 = vmatprep.subr.mxu0 %v275
        %307 = vmatpush1.msra.mxu0 %v274
        %308 = vmatprep.subr.mxu0 %v277
        %309 = vmatpush1.msra.mxu0 %v276
        %310 = vmatprep.subr.mxu0 0.0
        %311 = vmatpush1.msra.mxu0 0.0
        %312 = vmatprep.subr.mxu0 0.0
        %313 = vmatpush1.msra.mxu0 0.0
        %314 = vmatprep.subr.mxu0 0.0
        %315 = vmatpush1.msra.mxu0 0.0
        %316 = vmatprep.subr.mxu0 0.0
        %317 = vmatpush1.msra.mxu0 0.0
        %318 = vmatprep.subr.mxu0 0.0
        %319 = vmatpush1.msra.mxu0 0.0
        %320 = vmatprep.subr.mxu0 0.0
        %321 = vmatpush1.msra.mxu0 0.0
        %322 = vmatprep.subr.mxu0 0.0
        %323 = vmatpush1.msra.mxu0 0.0
        %324 = vmatprep.subr.mxu0 0.0
        %325 = vmatpush1.msra.mxu0 0.0
        %326 = vmatprep.subr.mxu0 0.0
        %327 = vmatpush1.msra.mxu0 0.0
        %328 = vmatprep.subr.mxu0 0.0
        %329 = vmatpush1.msra.mxu0 0.0
        %330 = vmatprep.subr.mxu0 0.0
        %331 = vmatpush1.msra.mxu0 0.0
        %332 = vmatprep.subr.mxu0 0.0
        %333 = vmatpush1.msra.mxu0 0.0
        %334 = vmatprep.subr.mxu0 0.0
        %335 = vmatpush1.msra.mxu0 0.0
        %336 = vmatprep.subr.mxu0 0.0
        %337 = vmatpush1.msra.mxu0 0.0
        %338 = vmatprep.subr.mxu0 0.0
        %339 = vmatpush1.msra.mxu0 0.0
        %340 = vmatprep.subr.mxu0 0.0
        %341 = vmatpush1.msra.mxu0 0.0
        %342 = vmatprep.mubr.f32.mxu0 0.0
        %343 = vmatmul.mubr.f32.gmra.mrb[0].mxu0 %v245
        %v344 = vpop.f32.mrb[0].mxu0
        %v345 = vadd.f32 0.0, %v344
        %v346 = vpop.f32.mrb[0].mxu0
        %v347 = vadd.f32 0.0, %v346
        %348 = vdwg.mxu0
        %v349 = vxor.u32 %v345, 2147483648
        %v350 = vxor.u32 %v347, 2147483648
        %v351 = vmul.f32 %v349, 1.442695
        %v352 = vpow.pop %v351
        %v353 = vmul.f32 %v350, 1.442695
        %v354 = vpow.pop %v353
        %v355 = vadd.f32 %v352, 1.0
        %v356 = vadd.f32 %v354, 1.0
        %v357 = vrcp.pop %v355
        %v358 = vmul.f32 1.0, %v357
        %v359 = vrcp.pop %v356
        %v360 = vmul.f32 1.0, %v359
        %v361 = vmul.f32 %v345, %v358
        %v362 = vmul.f32 %v347, %v360
        %v363 = vld [vmem:[#allocation8] sm:$0xff]
        %v364 = vld [vmem:[#allocation8 + $0x8] sm:$0xff]
        %v365 = vld [vmem:[#allocation8 + $0x10] sm:$0xff]
        %v366 = vld [vmem:[#allocation8 + $0x18] sm:$0xff]
        %v367 = vld [vmem:[#allocation8 + $0x20] sm:$0xff]
        %v368 = vld [vmem:[#allocation8 + $0x28] sm:$0xff]
        %v369 = vld [vmem:[#allocation8 + $0x30] sm:$0xff]
        %v370 = vld [vmem:[#allocation8 + $0x38] sm:$0xff]
        %v371 = vld [vmem:[#allocation8 + $0x40] sm:$0xff]
        %v372 = vld [vmem:[#allocation8 + $0x48] sm:$0xff]
        %v373 = vld [vmem:[#allocation8 + $0x50] sm:$0xff]
        %v374 = vld [vmem:[#allocation8 + $0x58] sm:$0xff]
        %v375 = vld [vmem:[#allocation8 + $0x60] sm:$0xff]
        %v376 = vld [vmem:[#allocation8 + $0x68] sm:$0xff]
        %v377 = vld [vmem:[#allocation8 + $0x70] sm:$0xff]
        %v378 = vld [vmem:[#allocation8 + $0x78] sm:$0xff]
        %v379 = vld [vmem:[#allocation8 + $0x80] sm:$0xff]
        %v380 = vld [vmem:[#allocation8 + $0x88] sm:$0xff]
        %v381 = vld [vmem:[#allocation8 + $0x90] sm:$0xff]
        %v382 = vld [vmem:[#allocation8 + $0x98] sm:$0xff]
        %v383 = vld [vmem:[#allocation8 + $0xa0] sm:$0xff]
        %v384 = vld [vmem:[#allocation8 + $0xa8] sm:$0xff]
        %v385 = vld [vmem:[#allocation8 + $0xb0] sm:$0xff]
        %v386 = vld [vmem:[#allocation8 + $0xb8] sm:$0xff]
        %v387 = vld [vmem:[#allocation8 + $0xc0] sm:$0xff]
        %v388 = vld [vmem:[#allocation8 + $0xc8] sm:$0xff]
        %v389 = vld [vmem:[#allocation8 + $0xd0] sm:$0xff]
        %v390 = vld [vmem:[#allocation8 + $0xd8] sm:$0xff]
        %v391 = vld [vmem:[#allocation8 + $0xe0] sm:$0xff]
        %v392 = vld [vmem:[#allocation8 + $0xe8] sm:$0xff]
        %v393 = vld [vmem:[#allocation8 + $0xf0] sm:$0xff]
        %v394 = vld [vmem:[#allocation8 + $0xf8] sm:$0xff]
        %395 = vmatprep.subr.mxu0 0.0
        %396 = vmatpush1.msra.mxu0 %v363
        %397 = vmatprep.subr.mxu0 0.0
        %398 = vmatpush1.msra.mxu0 %v364
        %399 = vmatprep.subr.mxu0 0.0
        %400 = vmatpush1.msra.mxu0 %v365
        %401 = vmatprep.subr.mxu0 0.0
        %402 = vmatpush1.msra.mxu0 %v366
        %403 = vmatprep.subr.mxu0 0.0
        %404 = vmatpush1.msra.mxu0 %v367
        %405 = vmatprep.subr.mxu0 0.0
        %406 = vmatpush1.msra.mxu0 %v368
        %407 = vmatprep.subr.mxu0 0.0
        %408 = vmatpush1.msra.mxu0 %v369
        %409 = vmatprep.subr.mxu0 0.0
        %410 = vmatpush1.msra.mxu0 %v370
        %411 = vmatprep.subr.mxu0 0.0
        %412 = vmatpush1.msra.mxu0 %v371
        %413 = vmatprep.subr.mxu0 0.0
        %414 = vmatpush1.msra.mxu0 %v372
        %415 = vmatprep.subr.mxu0 0.0
        %416 = vmatpush1.msra.mxu0 %v373
        %417 = vmatprep.subr.mxu0 0.0
        %418 = vmatpush1.msra.mxu0 %v374
        %419 = vmatprep.subr.mxu0 0.0
        %420 = vmatpush1.msra.mxu0 %v375
        %421 = vmatprep.subr.mxu0 0.0
        %422 = vmatpush1.msra.mxu0 %v376
        %423 = vmatprep.subr.mxu0 0.0
        %424 = vmatpush1.msra.mxu0 %v377
        %425 = vmatprep.subr.mxu0 0.0
        %426 = vmatpush1.msra.mxu0 %v378
        %427 = vmatprep.subr.mxu0 0.0
        %428 = vmatpush1.msra.mxu0 %v379
        %429 = vmatprep.subr.mxu0 0.0
        %430 = vmatpush1.msra.mxu0 %v380
        %431 = vmatprep.subr.mxu0 0.0
        %432 = vmatpush1.msra.mxu0 %v381
        %433 = vmatprep.subr.mxu0 0.0
        %434 = vmatpush1.msra.mxu0 %v382
        %435 = vmatprep.subr.mxu0 0.0
        %436 = vmatpush1.msra.mxu0 %v383
        %437 = vmatprep.subr.mxu0 0.0
        %438 = vmatpush1.msra.mxu0 %v384
        %439 = vmatprep.subr.mxu0 0.0
        %440 = vmatpush1.msra.mxu0 %v385
        %441 = vmatprep.subr.mxu0 0.0
        %442 = vmatpush1.msra.mxu0 %v386
        %443 = vmatprep.subr.mxu0 0.0
        %444 = vmatpush1.msra.mxu0 %v387
        %445 = vmatprep.subr.mxu0 0.0
        %446 = vmatpush1.msra.mxu0 %v388
        %447 = vmatprep.subr.mxu0 0.0
        %448 = vmatpush1.msra.mxu0 %v389
        %449 = vmatprep.subr.mxu0 0.0
        %450 = vmatpush1.msra.mxu0 %v390
        %451 = vmatprep.subr.mxu0 0.0
        %452 = vmatpush1.msra.mxu0 %v391
        %453 = vmatprep.subr.mxu0 0.0
        %454 = vmatpush1.msra.mxu0 %v392
        %455 = vmatprep.subr.mxu0 0.0
        %456 = vmatpush1.msra.mxu0 %v393
        %457 = vmatprep.subr.mxu0 0.0
        %458 = vmatpush1.msra.mxu0 %v394
        %459 = vmatprep.mubr.f32.mxu0 %v362
        %460 = vmatmul.mubr.f32.gmra.mrb[0].mxu0 %v361
        %v461 = vpop.f32.mrb[0].mxu0
        %v462 = vadd.f32 0.0, %v461
        %v463 = vpop.f32.mrb[0].mxu0
        %464 = vdwg.mxu0
        %465 = vst [vmem:[%s242] sm:$0xff] %v462
        %s466 = sand.u32 %s119, 1
        %s467 = scalar_lea.sflag [#allocation5], %s466
        %s468 = sand.u32 %s119, 1
        %s469 = smul.addr %s468, 8
        %s470 = scalar_lea.vmem [#allocation9], %s469
        // Predicated region
        $region45: #{tpu_custom_call.1} parent=31 // pred_check
          %p471 = pneg %p129
        $region46: #{tpu_custom_call.1} parent=31 // pred_check_branch
          %473 = sbr.rel (%p471) target = $region48
        $region47: #{tpu_custom_call.1} parent=31 // pred_region
          %s475 = ssub.s32 128, 128
          %476 = vsyncadd %s467, %s475
          %s477 = smul.addr %s25, 128
          %s478 = scalar_lea.hbm %s3, %s477
          %s480 = sshll.u32 %s470, 4
          %s481 = int_to_ptr.vmem [resolvable:$true] %s480
          %483 = dma.vmem_to_hbm [thread:$0]  %s481, 128, %s478, %s467
        $region48: #{tpu_custom_call.1} parent=31 // pred_fallthru
          _
      $region32: #{tpu_custom_call.1} parent=5 // pred_fallthru
        _
      %p484 = scmp.le.s32.totalorder 2, %s16
      // Predicated region
      $region49: #{tpu_custom_call.1} parent=5 // pred_check
        %p485 = pneg %p484
      $region50: #{tpu_custom_call.1} parent=5 // pred_check_branch
        %487 = sbr.rel (%p485) target = $region52
      $region51: #{tpu_custom_call.1} parent=5 // pred_region
        %s488 = ssub.s32 %s16, 2
        // Predicated region
        $region53: #{tpu_custom_call.1} parent=51 // pred_check
          %p489 = pneg %p135
        $region54: #{tpu_custom_call.1} parent=51 // pred_check_branch
          %491 = sbr.rel (%p489) target = $region56
        $region55: #{tpu_custom_call.1} parent=51 // pred_region
          %s492 = sand.u32 %s120, 1
          %s493 = scalar_lea.sflag [#allocation5], %s492
          %s494 = sand.u32 %s120, 1
          %s495 = smul.addr %s494, 8
          %s496 = scalar_lea.vmem [#allocation9], %s495
          %497 = dma.done %s493, 128
        $region56: #{tpu_custom_call.1} parent=51 // pred_fallthru
          _
      $region52: #{tpu_custom_call.1} parent=5 // pred_fallthru
        _
    $region6: #{tpu_custom_call.1} parent=1 // loop_footer
      %s20 = sadd.s32 1, %s16
    $region7: #{tpu_custom_call.1} parent=1 // loop_footer_branch
      %15 = sbr.rel target = $region3
    $region8: #{tpu_custom_call.1} parent=1 // loop_exit
      _
    %498 = vsyncpa [#allocation4], 1
    %s499 = scalar_lea.sflag [#allocation4], 1
    %500 = vsyncpa %s499, 1
    %501 = vsyncpa [#allocation7], 1
    %502 = vsyncpa [#allocation5], 1
    %s503 = scalar_lea.sflag [#allocation5], 1
    %504 = vsyncpa %s503, 1

</llo_original>
